<compile_context>
chip_gen: v5e
topology: v5e:2x2
jax: 0.10.0
libtpu: 0.0.40
codegen_flags: <defaults>
</compile_context>

<pallas_src>
import jax
import jax.numpy as jnp
from jax.experimental import pallas as pl
from jax.experimental.pallas import tpu as pltpu

SEQ_LEN = 224                                       # enforced, same as the PyTorch module
KSIZE = 7
STRIDE = 2
PAD = 3
L_OUT = (SEQ_LEN + 2 * PAD - KSIZE) // STRIDE + 1   # 112 kept conv positions
OUT_PAD = 128                                       # pad logits to a full 128-lane store
NUM_CLASSES = 2
CHUNK = 8                                           # breaths per grid step (~32-vreg accumulator)


def _fused_kernel(x_ref, wc_ref, bc_ref, wl_ref, bl_ref, out_ref):
    # x_ref : [KC, CHUNK, L_OUT]  pre-shifted stride-2 taps (time on lanes)
    # wc_ref: [F, KC]             conv taps, one lane-dense tile
    # bc_ref: [F, 1]              conv bias
    # wl_ref: [F, OUT_PAD]        final linear weight (zero-padded cols beyond NUM_CLASSES)
    # bl_ref: [1, OUT_PAD]        final linear bias (zero-padded)
    # out_ref:[CHUNK, OUT_PAD]
    KC, CH, S = x_ref.shape
    F = wc_ref.shape[0]

    # --- conv at only the 112 kept positions: KC shifted MACs on the VPU ---
    # init with tap 0's product + bias (saves a zero-fill and a bias pass)
    h = wc_ref[:, 0:1][None] * x_ref[0][:, None, :] + bc_ref[...][None]   # [CH, F, S]
    for ck in range(1, KC):
        h = h + wc_ref[:, ck:ck + 1][None] * x_ref[ck][:, None, :]

    # ReLU + temporal mean (plain lane reduce; stride-2 already folded into x_taps)
    feat = jnp.sum(jnp.maximum(h, 0.0), axis=2) * (1.0 / S)               # [CH, F]

    # --- final linear on the MXU; padded output -> unmasked 128-lane store ---
    out = jnp.dot(feat, wl_ref[...], preferred_element_type=jnp.float32) + bl_ref[...]
    out_ref[...] = out.astype(out_ref.dtype)


def cnn_single_breath_linear_forward(x, metadata, params):
    """Forward pass. x: [batch, breaths, C, 224]. metadata is unused (as in PyTorch)."""
    if x.shape[-1] != SEQ_LEN:
        raise Exception('input breaths must have sequence length of 224')
    del metadata
    wc, bc, wl, bl = params        # wc: [F, C, K] (PyTorch conv layout), wl: [F, 2], bl: [2]
    B, breaths, C, L = x.shape
    F = wc.shape[0]
    BB = B * breaths
    KC = C * KSIZE

    # ---- stride-2 tap extraction: cheap XLA-side strided slices, no im2col blowup ----
    xp = jnp.pad(x.reshape(BB, C, L).astype(jnp.float32),
                 ((0, 0), (0, 0), (PAD, PAD)))                            # [BB, C, 230]
    # x_taps[c*K + k, b, j] = xp[b, c, 2j + k]   (only the kept output positions)
    x_taps = jnp.stack(
        [xp[:, c, k:k + STRIDE * L_OUT:STRIDE] for c in range(C) for k in range(KSIZE)],
        axis=0)                                                           # [KC, BB, L_OUT]

    # pad BB up to a multiple of CHUNK (extra rows are zeros; their logits are sliced off)
    n_chunks = (BB + CHUNK - 1) // CHUNK
    BBp = n_chunks * CHUNK
    if BBp != BB:
        x_taps = jnp.pad(x_taps, ((0, 0), (0, BBp - BB), (0, 0)))

    # ---- lane-dense parameter layouts ----
    wc2 = wc.reshape(F, KC).astype(jnp.float32)                           # [F, KC] (c-major, matches x_taps)
    bc2 = bc.reshape(F, 1).astype(jnp.float32)                            # [F, 1]
    wl_pad = jnp.zeros((F, OUT_PAD), jnp.float32).at[:, :NUM_CLASSES].set(wl)
    bl_pad = jnp.zeros((1, OUT_PAD), jnp.float32).at[0, :NUM_CLASSES].set(bl)

    flops = (2 * BBp * KC * F * L_OUT            # conv MACs
             + 2 * BBp * F * L_OUT               # ReLU + pool
             + 2 * BBp * F * OUT_PAD)            # final linear
    bytes_accessed = 4 * (x_taps.size + wc2.size + bc2.size +
                          wl_pad.size + bl_pad.size + BBp * OUT_PAD)

    out = pl.pallas_call(
        _fused_kernel,
        out_shape=jax.ShapeDtypeStruct((BBp, OUT_PAD), jnp.float32),
        grid=(n_chunks,),
        in_specs=[
            pl.BlockSpec((KC, CHUNK, L_OUT), lambda i: (0, i, 0)),        # x taps: chunk of breaths
            pl.BlockSpec((F, KC), lambda i: (0, 0)),                      # conv weights (resident)
            pl.BlockSpec((F, 1), lambda i: (0, 0)),                       # conv bias
            pl.BlockSpec((F, OUT_PAD), lambda i: (0, 0)),                 # linear weight
            pl.BlockSpec((1, OUT_PAD), lambda i: (0, 0)),                 # linear bias
        ],
        out_specs=pl.BlockSpec((CHUNK, OUT_PAD), lambda i: (i, 0)),
        compiler_params=pltpu.CompilerParams(
            dimension_semantics=("parallel",)),
        cost_estimate=pl.CostEstimate(flops=flops, transcendentals=0,
                                      bytes_accessed=bytes_accessed),
    )(x_taps, wc2, bc2, wl_pad, bl_pad)

    return out[:BB, :NUM_CLASSES].reshape(B, breaths, NUM_CLASSES)


def _reference(x, params):
    """Pure-JAX reference matching the PyTorch semantics (per-batch loop)."""
    wc, bc, wl, bl = params
    outs = []
    for i in range(x.shape[0]):
        h = jax.lax.conv_general_dilated(
            x[i], wc, window_strides=(STRIDE,), padding=[(PAD, PAD)],
            dimension_numbers=('NCH', 'OIH', 'NCH'))
        h = jnp.maximum(h + bc[None, :, None], 0.0)
        feat = jnp.mean(h, axis=-1)                 # [breaths, F]
        outs.append(feat @ wl + bl)                 # [breaths, 2]
    return jnp.stack(outs, axis=0)


if __name__ == "__main__":
    key = jax.random.PRNGKey(0)
    k_x, k_wc, k_bc, k_wl, k_bl = jax.random.split(key, 5)

    B, BREATHS, C, F = 2, 8, 1, 32   # n_out_filters = 32 for the synthetic breath_block

    x = jax.random.normal(k_x, (B, BREATHS, C, SEQ_LEN), dtype=jnp.float32)
    metadata = jnp.zeros((B, BREATHS, 4), dtype=jnp.float32)   # unused, as in PyTorch

    wc = 0.1 * jax.random.normal(k_wc, (F, C, KSIZE), dtype=jnp.float32)
    bc = 0.1 * jax.random.normal(k_bc, (F,), dtype=jnp.float32)
    wl = 0.1 * jax.random.normal(k_wl, (F, NUM_CLASSES), dtype=jnp.float32)  # Linear weight, pre-transposed
    bl = 0.1 * jax.random.normal(k_bl, (NUM_CLASSES,), dtype=jnp.float32)
    params = (wc, bc, wl, bl)

    out = cnn_single_breath_linear_forward(x, metadata, params)
    out = jax.block_until_ready(out)

    ref = _reference(x, params)
    assert out.shape == (B, BREATHS, NUM_CLASSES), out.shape
    assert jnp.allclose(out, ref, rtol=1e-4, atol=1e-4), "mismatch vs reference"

    print("KERNEL_OK")
</pallas_src>

<mosaic_0001>
module attributes {stable_mosaic.version = 11 : i64} {
  func.func @_fused_kernel(%arg0: i32, %arg1: memref<7x8x112xf32, #tpu.memory_space<vmem>>, %arg2: memref<32x7xf32, #tpu.memory_space<vmem>>, %arg3: memref<32x1xf32, #tpu.memory_space<vmem>>, %arg4: memref<32x128xf32, #tpu.memory_space<vmem>>, %arg5: memref<1x128xf32, #tpu.memory_space<vmem>>, %arg6: memref<8x128xf32, #tpu.memory_space<vmem>>) attributes {dimension_semantics = [#tpu.dimension_semantics<parallel>], iteration_bounds = array<i64: 2>, scalar_prefetch = 0 : i64, scratch_operands = 0 : i64, tpu.core_type = #tpu.core_type<tc>, window_params = [{transform_indices = @transform_0, window_bounds = array<i64: 7, 8, 112>}, {pipeline_mode = #tpu.pipeline_mode<synchronous>, transform_indices = @transform_1, window_bounds = array<i64: 32, 7>}, {pipeline_mode = #tpu.pipeline_mode<synchronous>, transform_indices = @transform_2, window_bounds = array<i64: 32, 1>}, {pipeline_mode = #tpu.pipeline_mode<synchronous>, transform_indices = @transform_3, window_bounds = array<i64: 32, 128>}, {pipeline_mode = #tpu.pipeline_mode<synchronous>, transform_indices = @transform_4, window_bounds = array<i64: 1, 128>}, {transform_indices = @transform_5, window_bounds = array<i64: 8, 128>}]} {
    %c0 = arith.constant 0 : index
    %c0_0 = arith.constant 0 : index
    %0 = vector.load %arg2[%c0, %c0_0] : memref<32x7xf32, #tpu.memory_space<vmem>>, vector<32x1xf32>
    %1 = vector.shape_cast %0 : vector<32x1xf32> to vector<1x32x1xf32>
    %c0_1 = arith.constant 0 : index
    %c0_2 = arith.constant 0 : index
    %c0_3 = arith.constant 0 : index
    %2 = vector.load %arg1[%c0_1, %c0_2, %c0_3] : memref<7x8x112xf32, #tpu.memory_space<vmem>>, vector<1x8x112xf32>
    %3 = vector.shape_cast %2 : vector<1x8x112xf32> to vector<8x112xf32>
    %4 = vector.shape_cast %3 : vector<8x112xf32> to vector<8x1x112xf32>
    %5 = vector.broadcast %1 : vector<1x32x1xf32> to vector<8x32x112xf32>
    %6 = vector.broadcast %4 : vector<8x1x112xf32> to vector<8x32x112xf32>
    %7 = arith.mulf %5, %6 : vector<8x32x112xf32>
    %c0_4 = arith.constant 0 : index
    %c0_5 = arith.constant 0 : index
    %8 = vector.load %arg3[%c0_4, %c0_5] : memref<32x1xf32, #tpu.memory_space<vmem>>, vector<32x1xf32>
    %9 = vector.shape_cast %8 : vector<32x1xf32> to vector<1x32x1xf32>
    %10 = vector.broadcast %9 : vector<1x32x1xf32> to vector<8x32x112xf32>
    %11 = arith.addf %7, %10 : vector<8x32x112xf32>
    %c0_6 = arith.constant 0 : index
    %c1 = arith.constant 1 : index
    %12 = vector.load %arg2[%c0_6, %c1] : memref<32x7xf32, #tpu.memory_space<vmem>>, vector<32x1xf32>
    %13 = vector.shape_cast %12 : vector<32x1xf32> to vector<1x32x1xf32>
    %c1_7 = arith.constant 1 : index
    %c0_8 = arith.constant 0 : index
    %c0_9 = arith.constant 0 : index
    %14 = vector.load %arg1[%c1_7, %c0_8, %c0_9] : memref<7x8x112xf32, #tpu.memory_space<vmem>>, vector<1x8x112xf32>
    %15 = vector.shape_cast %14 : vector<1x8x112xf32> to vector<8x112xf32>
    %16 = vector.shape_cast %15 : vector<8x112xf32> to vector<8x1x112xf32>
    %17 = vector.broadcast %13 : vector<1x32x1xf32> to vector<8x32x112xf32>
    %18 = vector.broadcast %16 : vector<8x1x112xf32> to vector<8x32x112xf32>
    %19 = arith.mulf %17, %18 : vector<8x32x112xf32>
    %20 = arith.addf %11, %19 : vector<8x32x112xf32>
    %c0_10 = arith.constant 0 : index
    %c2 = arith.constant 2 : index
    %21 = vector.load %arg2[%c0_10, %c2] : memref<32x7xf32, #tpu.memory_space<vmem>>, vector<32x1xf32>
    %22 = vector.shape_cast %21 : vector<32x1xf32> to vector<1x32x1xf32>
    %c2_11 = arith.constant 2 : index
    %c0_12 = arith.constant 0 : index
    %c0_13 = arith.constant 0 : index
    %23 = vector.load %arg1[%c2_11, %c0_12, %c0_13] : memref<7x8x112xf32, #tpu.memory_space<vmem>>, vector<1x8x112xf32>
    %24 = vector.shape_cast %23 : vector<1x8x112xf32> to vector<8x112xf32>
    %25 = vector.shape_cast %24 : vector<8x112xf32> to vector<8x1x112xf32>
    %26 = vector.broadcast %22 : vector<1x32x1xf32> to vector<8x32x112xf32>
    %27 = vector.broadcast %25 : vector<8x1x112xf32> to vector<8x32x112xf32>
    %28 = arith.mulf %26, %27 : vector<8x32x112xf32>
    %29 = arith.addf %20, %28 : vector<8x32x112xf32>
    %c0_14 = arith.constant 0 : index
    %c3 = arith.constant 3 : index
    %30 = vector.load %arg2[%c0_14, %c3] : memref<32x7xf32, #tpu.memory_space<vmem>>, vector<32x1xf32>
    %31 = vector.shape_cast %30 : vector<32x1xf32> to vector<1x32x1xf32>
    %c3_15 = arith.constant 3 : index
    %c0_16 = arith.constant 0 : index
    %c0_17 = arith.constant 0 : index
    %32 = vector.load %arg1[%c3_15, %c0_16, %c0_17] : memref<7x8x112xf32, #tpu.memory_space<vmem>>, vector<1x8x112xf32>
    %33 = vector.shape_cast %32 : vector<1x8x112xf32> to vector<8x112xf32>
    %34 = vector.shape_cast %33 : vector<8x112xf32> to vector<8x1x112xf32>
    %35 = vector.broadcast %31 : vector<1x32x1xf32> to vector<8x32x112xf32>
    %36 = vector.broadcast %34 : vector<8x1x112xf32> to vector<8x32x112xf32>
    %37 = arith.mulf %35, %36 : vector<8x32x112xf32>
    %38 = arith.addf %29, %37 : vector<8x32x112xf32>
    %c0_18 = arith.constant 0 : index
    %c4 = arith.constant 4 : index
    %39 = vector.load %arg2[%c0_18, %c4] : memref<32x7xf32, #tpu.memory_space<vmem>>, vector<32x1xf32>
    %40 = vector.shape_cast %39 : vector<32x1xf32> to vector<1x32x1xf32>
    %c4_19 = arith.constant 4 : index
    %c0_20 = arith.constant 0 : index
    %c0_21 = arith.constant 0 : index
    %41 = vector.load %arg1[%c4_19, %c0_20, %c0_21] : memref<7x8x112xf32, #tpu.memory_space<vmem>>, vector<1x8x112xf32>
    %42 = vector.shape_cast %41 : vector<1x8x112xf32> to vector<8x112xf32>
    %43 = vector.shape_cast %42 : vector<8x112xf32> to vector<8x1x112xf32>
    %44 = vector.broadcast %40 : vector<1x32x1xf32> to vector<8x32x112xf32>
    %45 = vector.broadcast %43 : vector<8x1x112xf32> to vector<8x32x112xf32>
    %46 = arith.mulf %44, %45 : vector<8x32x112xf32>
    %47 = arith.addf %38, %46 : vector<8x32x112xf32>
    %c0_22 = arith.constant 0 : index
    %c5 = arith.constant 5 : index
    %48 = vector.load %arg2[%c0_22, %c5] : memref<32x7xf32, #tpu.memory_space<vmem>>, vector<32x1xf32>
    %49 = vector.shape_cast %48 : vector<32x1xf32> to vector<1x32x1xf32>
    %c5_23 = arith.constant 5 : index
    %c0_24 = arith.constant 0 : index
    %c0_25 = arith.constant 0 : index
    %50 = vector.load %arg1[%c5_23, %c0_24, %c0_25] : memref<7x8x112xf32, #tpu.memory_space<vmem>>, vector<1x8x112xf32>
    %51 = vector.shape_cast %50 : vector<1x8x112xf32> to vector<8x112xf32>
    %52 = vector.shape_cast %51 : vector<8x112xf32> to vector<8x1x112xf32>
    %53 = vector.broadcast %49 : vector<1x32x1xf32> to vector<8x32x112xf32>
    %54 = vector.broadcast %52 : vector<8x1x112xf32> to vector<8x32x112xf32>
    %55 = arith.mulf %53, %54 : vector<8x32x112xf32>
    %56 = arith.addf %47, %55 : vector<8x32x112xf32>
    %c0_26 = arith.constant 0 : index
    %c6 = arith.constant 6 : index
    %57 = vector.load %arg2[%c0_26, %c6] : memref<32x7xf32, #tpu.memory_space<vmem>>, vector<32x1xf32>
    %58 = vector.shape_cast %57 : vector<32x1xf32> to vector<1x32x1xf32>
    %c6_27 = arith.constant 6 : index
    %c0_28 = arith.constant 0 : index
    %c0_29 = arith.constant 0 : index
    %59 = vector.load %arg1[%c6_27, %c0_28, %c0_29] : memref<7x8x112xf32, #tpu.memory_space<vmem>>, vector<1x8x112xf32>
    %60 = vector.shape_cast %59 : vector<1x8x112xf32> to vector<8x112xf32>
    %61 = vector.shape_cast %60 : vector<8x112xf32> to vector<8x1x112xf32>
    %62 = vector.broadcast %58 : vector<1x32x1xf32> to vector<8x32x112xf32>
    %63 = vector.broadcast %61 : vector<8x1x112xf32> to vector<8x32x112xf32>
    %64 = arith.mulf %62, %63 : vector<8x32x112xf32>
    %65 = arith.addf %56, %64 : vector<8x32x112xf32>
    %cst = arith.constant 0.000000e+00 : f32
    %66 = vector.broadcast %cst : f32 to vector<8x32x112xf32>
    %67 = arith.maximumf %65, %66 : vector<8x32x112xf32>
    %cst_30 = arith.constant dense<0.000000e+00> : vector<8x32xf32>
    %68 = vector.multi_reduction <add>, %67, %cst_30 [2] : vector<8x32x112xf32> to vector<8x32xf32>
    %cst_31 = arith.constant 0.00892857183 : f32
    %69 = vector.broadcast %cst_31 : f32 to vector<8x32xf32>
    %70 = arith.mulf %68, %69 : vector<8x32xf32>
    %c0_32 = arith.constant 0 : index
    %c0_33 = arith.constant 0 : index
    %71 = vector.load %arg4[%c0_32, %c0_33] : memref<32x128xf32, #tpu.memory_space<vmem>>, vector<32x128xf32>
    %cst_34 = arith.constant dense<0.000000e+00> : vector<8x128xf32>
    %72 = tpu.matmul %70, %71, %cst_34 {dimension_numbers = #tpu.dot_dimension_numbers<[1], [0], [0], [1], [0, 0, 1, 1], [], []>} : vector<8x32xf32>, vector<32x128xf32>, vector<8x128xf32> -> vector<8x128xf32>
    %c0_35 = arith.constant 0 : index
    %c0_36 = arith.constant 0 : index
    %73 = vector.load %arg5[%c0_35, %c0_36] : memref<1x128xf32, #tpu.memory_space<vmem>>, vector<1x128xf32>
    %74 = vector.broadcast %73 : vector<1x128xf32> to vector<8x128xf32>
    %75 = arith.addf %72, %74 : vector<8x128xf32>
    %c0_37 = arith.constant 0 : index
    %c0_38 = arith.constant 0 : index
    %76 = vector.load %arg6[%c0_37, %c0_38] : memref<8x128xf32, #tpu.memory_space<vmem>>, vector<8x128xf32>
    tpu.vector_store %arg6[%c0_37, %c0_38], %75 {strides = array<i32>} : memref<8x128xf32, #tpu.memory_space<vmem>>, vector<8x128xf32>,
    return
  }
  func.func @transform_0(%arg0: i32) -> (i32, i32, i32) {
    %c0_i32 = arith.constant 0 : i32
    %c0_i32_0 = arith.constant 0 : i32
    %c0_i32_1 = arith.constant 0 : i32
    return %c0_i32, %arg0, %c0_i32_0 : i32, i32, i32
  }
  func.func @transform_1(%arg0: i32) -> (i32, i32) {
    %c0_i32 = arith.constant 0 : i32
    %c0_i32_0 = arith.constant 0 : i32
    %c0_i32_1 = arith.constant 0 : i32
    return %c0_i32, %c0_i32_0 : i32, i32
  }
  func.func @transform_2(%arg0: i32) -> (i32, i32) {
    %c0_i32 = arith.constant 0 : i32
    %c0_i32_0 = arith.constant 0 : i32
    %c0_i32_1 = arith.constant 0 : i32
    return %c0_i32, %c0_i32_0 : i32, i32
  }
  func.func @transform_3(%arg0: i32) -> (i32, i32) {
    %c0_i32 = arith.constant 0 : i32
    %c0_i32_0 = arith.constant 0 : i32
    %c0_i32_1 = arith.constant 0 : i32
    return %c0_i32, %c0_i32_0 : i32, i32
  }
  func.func @transform_4(%arg0: i32) -> (i32, i32) {
    %c0_i32 = arith.constant 0 : i32
    %c0_i32_0 = arith.constant 0 : i32
    %c0_i32_1 = arith.constant 0 : i32
    return %c0_i32, %c0_i32_0 : i32, i32
  }
  func.func @transform_5(%arg0: i32) -> (i32, i32) {
    %c0_i32 = arith.constant 0 : i32
    %c0_i32_0 = arith.constant 0 : i32
    return %arg0, %c0_i32 : i32, i32
  }
}

</mosaic_0001>

<llo_original>
// kernel: tpu_custom_call.1
$region0: #{tpu_custom_call.1}
  #allocation0 [shape = 'u32[]', space=smem, size = 0x4, offset = 0x4, fixed_abs, tag = 'smem constant byte address 0x4 - core index']
  #allocation1 [shape = 'u32[72,128]{1,0:T(1,128)}', space=vmem, size = 0x9000, scoped, tag = 'internal scratch']
  %s0 = inlined_call_operand.hbm [shape: f32[7,16,112], index: 0, kind: input, shape index: {}]
  %s1 = inlined_call_operand.vmem [shape: f32[32,7], index: 1, kind: input, shape index: {}]
  %s2 = inlined_call_operand.vmem [shape: f32[32,1], index: 2, kind: input, shape index: {}]
  %s3 = inlined_call_operand.vmem [shape: f32[32,128], index: 3, kind: input, shape index: {}]
  %s4 = inlined_call_operand.vmem [shape: f32[1,128], index: 4, kind: input, shape index: {}]
  %s5 = inlined_call_operand.hbm [shape: f32[16,128], index: 5, kind: output, shape index: {}]
  %s6 = sld [smem:[#allocation0]]
  $region57: #{tpu_custom_call.1} parent=0
    _
  %s8 = ssub.s32 1, %s6
  %s9 = scalar_select 0, %s8, %s6
  $region1: #{tpu_custom_call.1} parent=0
    #allocation2 [shape = 'u8[57344]{0}', space=vmem, size = 0xe000, scoped, tag = 'input window, operand 0']
    #allocation3 [shape = 's32[2]{0}', space=sflag, size = 0x8, scoped, tag = 'scoped memory for tpu_custom_call.1']
    #allocation4 [shape = 's32[2]{0}', space=sflag, size = 0x8, scoped, tag = 'scoped memory for tpu_custom_call.1']
    #allocation5 [shape = 'u8[8192]{0}', space=vmem, size = 0x2000, scoped, tag = 'output window, operand 0']
    %10 = vsyncpa [#allocation3], 0
    %s11 = scalar_lea.sflag [#allocation3], 1
    %12 = vsyncpa %s11, 0
    %13 = vsyncpa [#allocation4], 0
    %s14 = scalar_lea.sflag [#allocation4], 1
    %15 = vsyncpa %s14, 0
    loop: start=0, step=1, limit=4
    $region2: #{tpu_custom_call.1} parent=1 // loop_pre_header
      _
    $region3: #{tpu_custom_call.1} parent=1 // loop_header
      %s17 = sphi 0, %s21
      %p18 = scmp.ge.s32.totalorder %s17, 4
      %s27 = sphi 0, %s29
      %s30 = sphi 0, %s27
      %s31 = sphi 0, %s30
      %s47 = sphi 0, %s31
      %s51 = sphi 0, %s51
      %s53 = sphi 0, %s51
      %s54 = sphi 0, %s53
      %s68 = sphi 0, %s54
      %s72 = sphi 0, %s72
      %s74 = sphi 0, %s72
      %s75 = sphi 0, %s74
      %s89 = sphi 0, %s75
      %s93 = sphi 0, %s93
      %s95 = sphi 0, %s93
      %s96 = sphi 0, %s95
      %s110 = sphi 0, %s96
      %s114 = sphi 0, %s114
      %s116 = sphi 0, %s114
      %s117 = sphi 0, %s116
      %s131 = sphi 0, %s117
      %s137 = sphi 0, %s139
      %s140 = sphi 0, %s137
      %s141 = sphi 0, %s140
      %s157 = sphi 0, %s141
    $region4: #{tpu_custom_call.1} parent=1 // loop_header_branch
      %20 = sbr.rel (%p18) target = $region8
    $region5: #{tpu_custom_call.1} parent=1 // loop_body
      %s22 = ssub.s32 %s17, 1
      %s23 = ssub.s32 %s17, 2
      %s24 = sadd.s32 %s17, 1
      %s25 = ssub.s32 %s17, %s24
      %p26 = scmp.eq.s32.totalorder %s25, 0
      %s28 = sadd.s32 %s27, 1
      %s29 = scalar_select %p26, %s27, %s28
      %p32 = pneg %p26
      %p33 = scmp.eq.s32.totalorder %s17, 1
      %p34 = por %p32, %p33
      %p35 = scmp.ne.s32.totalorder %s27, %s30
      %p36 = scmp.eq.s32.totalorder %s17, 0
      %p37 = por %p35, %p36
      %p38 = scmp.ne.s32.totalorder %s27, %s30
      %p39 = scmp.eq.s32.totalorder %s22, 1
      %p40 = por %p38, %p39
      %p41 = scmp.ne.s32.totalorder %s30, %s31
      %p42 = scmp.eq.s32.totalorder %s22, 0
      %p43 = por %p41, %p42
      %p44 = scmp.ne.s32.totalorder %s30, %s31
      %p45 = scmp.eq.s32.totalorder %s23, 1
      %p46 = por %p44, %p45
      %p48 = scmp.ne.s32.totalorder %s31, %s47
      %p49 = scmp.eq.s32.totalorder %s23, 0
      %p50 = por %p48, %p49
      %s52 = sadd.s32 %s51, 1
      %p55 = scmp.eq.s32.totalorder %s17, 1
      %p56 = scmp.ne.s32.totalorder %s51, %s53
      %p57 = scmp.eq.s32.totalorder %s17, 0
      %p58 = por %p56, %p57
      %p59 = scmp.ne.s32.totalorder %s51, %s53
      %p60 = scmp.eq.s32.totalorder %s22, 1
      %p61 = por %p59, %p60
      %p62 = scmp.ne.s32.totalorder %s53, %s54
      %p63 = scmp.eq.s32.totalorder %s22, 0
      %p64 = por %p62, %p63
      %p65 = scmp.ne.s32.totalorder %s53, %s54
      %p66 = scmp.eq.s32.totalorder %s23, 1
      %p67 = por %p65, %p66
      %p69 = scmp.ne.s32.totalorder %s54, %s68
      %p70 = scmp.eq.s32.totalorder %s23, 0
      %p71 = por %p69, %p70
      %s73 = sadd.s32 %s72, 1
      %p76 = scmp.eq.s32.totalorder %s17, 1
      %p77 = scmp.ne.s32.totalorder %s72, %s74
      %p78 = scmp.eq.s32.totalorder %s17, 0
      %p79 = por %p77, %p78
      %p80 = scmp.ne.s32.totalorder %s72, %s74
      %p81 = scmp.eq.s32.totalorder %s22, 1
      %p82 = por %p80, %p81
      %p83 = scmp.ne.s32.totalorder %s74, %s75
      %p84 = scmp.eq.s32.totalorder %s22, 0
      %p85 = por %p83, %p84
      %p86 = scmp.ne.s32.totalorder %s74, %s75
      %p87 = scmp.eq.s32.totalorder %s23, 1
      %p88 = por %p86, %p87
      %p90 = scmp.ne.s32.totalorder %s75, %s89
      %p91 = scmp.eq.s32.totalorder %s23, 0
      %p92 = por %p90, %p91
      %s94 = sadd.s32 %s93, 1
      %p97 = scmp.eq.s32.totalorder %s17, 1
      %p98 = scmp.ne.s32.totalorder %s93, %s95
      %p99 = scmp.eq.s32.totalorder %s17, 0
      %p100 = por %p98, %p99
      %p101 = scmp.ne.s32.totalorder %s93, %s95
      %p102 = scmp.eq.s32.totalorder %s22, 1
      %p103 = por %p101, %p102
      %p104 = scmp.ne.s32.totalorder %s95, %s96
      %p105 = scmp.eq.s32.totalorder %s22, 0
      %p106 = por %p104, %p105
      %p107 = scmp.ne.s32.totalorder %s95, %s96
      %p108 = scmp.eq.s32.totalorder %s23, 1
      %p109 = por %p107, %p108
      %p111 = scmp.ne.s32.totalorder %s96, %s110
      %p112 = scmp.eq.s32.totalorder %s23, 0
      %p113 = por %p111, %p112
      %s115 = sadd.s32 %s114, 1
      %p118 = scmp.eq.s32.totalorder %s17, 1
      %p119 = scmp.ne.s32.totalorder %s114, %s116
      %p120 = scmp.eq.s32.totalorder %s17, 0
      %p121 = por %p119, %p120
      %p122 = scmp.ne.s32.totalorder %s114, %s116
      %p123 = scmp.eq.s32.totalorder %s22, 1
      %p124 = por %p122, %p123
      %p125 = scmp.ne.s32.totalorder %s116, %s117
      %p126 = scmp.eq.s32.totalorder %s22, 0
      %p127 = por %p125, %p126
      %p128 = scmp.ne.s32.totalorder %s116, %s117
      %p129 = scmp.eq.s32.totalorder %s23, 1
      %p130 = por %p128, %p129
      %p132 = scmp.ne.s32.totalorder %s117, %s131
      %p133 = scmp.eq.s32.totalorder %s23, 0
      %p134 = por %p132, %p133
      %s135 = ssub.s32 %s17, %s24
      %p136 = scmp.eq.s32.totalorder %s135, 0
      %s138 = sadd.s32 %s137, 1
      %s139 = scalar_select %p136, %s137, %s138
      %p142 = pneg %p136
      %p143 = scmp.eq.s32.totalorder %s17, 1
      %p144 = por %p142, %p143
      %p145 = scmp.ne.s32.totalorder %s137, %s140
      %p146 = scmp.eq.s32.totalorder %s17, 0
      %p147 = por %p145, %p146
      %p148 = scmp.ne.s32.totalorder %s137, %s140
      %p149 = scmp.eq.s32.totalorder %s22, 1
      %p150 = por %p148, %p149
      %p151 = scmp.ne.s32.totalorder %s140, %s141
      %p152 = scmp.eq.s32.totalorder %s22, 0
      %p153 = por %p151, %p152
      %p154 = scmp.ne.s32.totalorder %s140, %s141
      %p155 = scmp.eq.s32.totalorder %s23, 1
      %p156 = por %p154, %p155
      %p158 = scmp.ne.s32.totalorder %s141, %s157
      %p159 = scmp.eq.s32.totalorder %s23, 0
      %p160 = por %p158, %p159
      %p161 = scmp.le.s32.totalorder 1, %s17
      %p162 = scmp.lt.s32.totalorder %s17, 3
      %p163 = pnand %p161, %p162
      %p164 = pneg %p163
      // Predicated region
      $region9: #{tpu_custom_call.1} parent=5 // pred_check
        _
      $region10: #{tpu_custom_call.1} parent=5 // pred_check_branch
        %166 = sbr.rel (%p163) target = $region12
      $region11: #{tpu_custom_call.1} parent=5 // pred_region
        %s167 = ssub.s32 %s17, 1
        // Predicated region
        $region13: #{tpu_custom_call.1} parent=11 // pred_check
          %p168 = pneg %p64
        $region14: #{tpu_custom_call.1} parent=11 // pred_check_branch
          %170 = sbr.rel (%p168) target = $region16
        $region15: #{tpu_custom_call.1} parent=11 // pred_region
          _
        $region16: #{tpu_custom_call.1} parent=11 // pred_fallthru
          _
        // Predicated region
        $region17: #{tpu_custom_call.1} parent=11 // pred_check
          %p171 = pneg %p85
        $region18: #{tpu_custom_call.1} parent=11 // pred_check_branch
          %173 = sbr.rel (%p171) target = $region20
        $region19: #{tpu_custom_call.1} parent=11 // pred_region
          _
        $region20: #{tpu_custom_call.1} parent=11 // pred_fallthru
          _
        // Predicated region
        $region21: #{tpu_custom_call.1} parent=11 // pred_check
          %p174 = pneg %p106
        $region22: #{tpu_custom_call.1} parent=11 // pred_check_branch
          %176 = sbr.rel (%p174) target = $region24
        $region23: #{tpu_custom_call.1} parent=11 // pred_region
          _
        $region24: #{tpu_custom_call.1} parent=11 // pred_fallthru
          _
        // Predicated region
        $region25: #{tpu_custom_call.1} parent=11 // pred_check
          %p177 = pneg %p127
        $region26: #{tpu_custom_call.1} parent=11 // pred_check_branch
          %179 = sbr.rel (%p177) target = $region28
        $region27: #{tpu_custom_call.1} parent=11 // pred_region
          _
        $region28: #{tpu_custom_call.1} parent=11 // pred_fallthru
          _
      $region12: #{tpu_custom_call.1} parent=5 // pred_fallthru
        _
      %p180 = scmp.lt.s32.totalorder %s17, 2
      // Predicated region
      $region29: #{tpu_custom_call.1} parent=5 // pred_check
        %p181 = pneg %p180
      $region30: #{tpu_custom_call.1} parent=5 // pred_check_branch
        %183 = sbr.rel (%p181) target = $region32
      $region31: #{tpu_custom_call.1} parent=5 // pred_region
        // Predicated region
        $region33: #{tpu_custom_call.1} parent=31 // pred_check
          %p184 = pneg %p37
        $region34: #{tpu_custom_call.1} parent=31 // pred_check_branch
          %186 = sbr.rel (%p184) target = $region36
        $region35: #{tpu_custom_call.1} parent=31 // pred_region
          %s187 = sand.u32 %s27, 1
          %s188 = scalar_lea.sflag [#allocation3], %s187
          %s189 = sand.u32 %s27, 1
          %s190 = smul.addr %s189, 56
          %s191 = scalar_lea.vmem [#allocation2], %s190
          %193 = vsyncadd %s188, 0
          %s194 = smul.addr %s17, 8
          %s195 = scalar_lea.hbm %s0, %s194
          %s196 = sshll.u32 %s195, 4
          %s197 = int_to_ptr.hbm [resolvable:$true] %s196
          %s198 = sshll.u32 %s191, 4
          %s199 = int_to_ptr.vmem [resolvable:$true] %s198
          %204 = dma.hbm_to_vmem [thread:$0]  %s197, 896, %s199, %s188, 256, 128, 8
        $region36: #{tpu_custom_call.1} parent=31 // pred_fallthru
          _
      $region32: #{tpu_custom_call.1} parent=5 // pred_fallthru
        _
      %p205 = scmp.le.s32.totalorder 1, %s17
      %p206 = scmp.lt.s32.totalorder %s17, 3
      %p207 = pnand %p205, %p206
      %p208 = pneg %p207
      // Predicated region
      $region37: #{tpu_custom_call.1} parent=5 // pred_check
        _
      $region38: #{tpu_custom_call.1} parent=5 // pred_check_branch
        %210 = sbr.rel (%p207) target = $region40
      $region39: #{tpu_custom_call.1} parent=5 // pred_region
        %s211 = ssub.s32 %s17, 1
        %s212 = sand.u32 %s30, 1
        %s213 = scalar_lea.sflag [#allocation3], %s212
        %s214 = sand.u32 %s30, 1
        %s215 = smul.addr %s214, 56
        %s216 = scalar_lea.vmem [#allocation2], %s215
        // Predicated region
        $region41: #{tpu_custom_call.1} parent=39 // pred_check
          %p217 = pneg %p43
        $region42: #{tpu_custom_call.1} parent=39 // pred_check_branch
          %219 = sbr.rel (%p217) target = $region44
        $region43: #{tpu_custom_call.1} parent=39 // pred_region
          %221 = dma.done %s213, 896
        $region44: #{tpu_custom_call.1} parent=39 // pred_fallthru
          _
        %s222 = sand.u32 %s30, 1
        %s223 = scalar_lea.sflag [#allocation3], %s222
        %s224 = sand.u32 %s30, 1
        %s225 = smul.addr %s224, 56
        %s226 = scalar_lea.vmem [#allocation2], %s225
        %p227 = pneg %p43
        %p228 = pneg %p40
        %p229 = pneg %p64
        %p230 = pneg %p61
        %p231 = pneg %p85
        %p232 = pneg %p82
        %p233 = pneg %p106
        %p234 = pneg %p103
        %p235 = pneg %p127
        %p236 = pneg %p124
        %p237 = pneg %p153
        %p238 = pneg %p150
        %s239 = sand.u32 %s140, 1
        %s240 = scalar_lea.sflag [#allocation4], %s239
        %s241 = sand.u32 %s140, 1
        %s242 = smul.addr %s241, 8
        %s243 = scalar_lea.vmem [#allocation5], %s242
        %v244 = vld [vmem:[%s1] sm:$0xff]
        %v245 = vld [vmem:[%s1 + $0x8] sm:$0xff]
        %v246 = vld [vmem:[%s1 + $0x10] sm:$0xff]
        %v247 = vld [vmem:[%s1 + $0x18] sm:$0xff]
        %v248 = vld [vmem:[%s216] sm:$0xff]
        %v250 = vrot.slane %v248, 1
        %v251 = vrot.slane %v248, 2
        %v252 = vrot.slane %v248, 3
        %v253 = vrot.slane %v248, 4
        %v254 = vrot.slane %v248, 5
        %v255 = vrot.slane %v248, 6
        %v256 = vrot.slane %v248, 7
        %258 = vset.pattern.permute.xlu0 0
        %259 = vperm.xlu0 %258, %v244
        %v260 = vpop.permute.xlu0 %259
        %263 = vset.pattern.permute.xlu0 0
        %264 = vperm.xlu0 %263, %v245
        %v265 = vpop.permute.xlu0 %264
        %268 = vset.pattern.permute.xlu0 0
        %269 = vperm.xlu0 %268, %v246
        %v270 = vpop.permute.xlu0 %269
        %273 = vset.pattern.permute.xlu0 0
        %274 = vperm.xlu0 %273, %v247
        %v275 = vpop.permute.xlu0 %274
        %v277 = vperm.slane %v248, 0
        %v278 = vperm.slane %v250, 0
        %v279 = vperm.slane %v251, 0
        %v280 = vperm.slane %v252, 0
        %v281 = vperm.slane %v253, 0
        %v282 = vperm.slane %v254, 0
        %v283 = vperm.slane %v255, 0
        %v284 = vperm.slane %v256, 0
        %v293 = vmul.f32 %v260, %v277
        %v294 = vmul.f32 %v265, %v277
        %v295 = vmul.f32 %v270, %v277
        %v296 = vmul.f32 %v275, %v277
        %v297 = vmul.f32 %v260, %v278
        %v298 = vmul.f32 %v265, %v278
        %v299 = vmul.f32 %v270, %v278
        %v300 = vmul.f32 %v275, %v278
        %v301 = vmul.f32 %v260, %v279
        %v302 = vmul.f32 %v265, %v279
        %v303 = vmul.f32 %v270, %v279
        %v304 = vmul.f32 %v275, %v279
        %v305 = vmul.f32 %v260, %v280
        %v306 = vmul.f32 %v265, %v280
        %v307 = vmul.f32 %v270, %v280
        %v308 = vmul.f32 %v275, %v280
        %v309 = vmul.f32 %v260, %v281
        %v310 = vmul.f32 %v265, %v281
        %v311 = vmul.f32 %v270, %v281
        %v312 = vmul.f32 %v275, %v281
        %v313 = vmul.f32 %v260, %v282
        %v314 = vmul.f32 %v265, %v282
        %v315 = vmul.f32 %v270, %v282
        %v316 = vmul.f32 %v275, %v282
        %v317 = vmul.f32 %v260, %v283
        %v318 = vmul.f32 %v265, %v283
        %v319 = vmul.f32 %v270, %v283
        %v320 = vmul.f32 %v275, %v283
        %v321 = vmul.f32 %v260, %v284
        %v322 = vmul.f32 %v265, %v284
        %v323 = vmul.f32 %v270, %v284
        %v324 = vmul.f32 %v275, %v284
        %v325 = vld [vmem:[%s2] sm:$0xff]
        %v326 = vld [vmem:[%s2 + $0x8] sm:$0xff]
        %v327 = vld [vmem:[%s2 + $0x10] sm:$0xff]
        %v328 = vld [vmem:[%s2 + $0x18] sm:$0xff]
        %330 = vset.pattern.permute.xlu0 0
        %331 = vperm.xlu0 %330, %v325
        %v332 = vpop.permute.xlu0 %331
        %335 = vset.pattern.permute.xlu0 0
        %336 = vperm.xlu0 %335, %v326
        %v337 = vpop.permute.xlu0 %336
        %340 = vset.pattern.permute.xlu0 0
        %341 = vperm.xlu0 %340, %v327
        %v342 = vpop.permute.xlu0 %341
        %345 = vset.pattern.permute.xlu0 0
        %346 = vperm.xlu0 %345, %v328
        %v347 = vpop.permute.xlu0 %346
        %v349 = vadd.f32 %v293, %v332
        %v350 = vadd.f32 %v294, %v337
        %v351 = vadd.f32 %v295, %v342
        %v352 = vadd.f32 %v296, %v347
        %v353 = vadd.f32 %v297, %v332
        %v354 = vadd.f32 %v298, %v337
        %v355 = vadd.f32 %v299, %v342
        %v356 = vadd.f32 %v300, %v347
        %v357 = vadd.f32 %v301, %v332
        %v358 = vadd.f32 %v302, %v337
        %v359 = vadd.f32 %v303, %v342
        %v360 = vadd.f32 %v304, %v347
        %v361 = vadd.f32 %v305, %v332
        %v362 = vadd.f32 %v306, %v337
        %v363 = vadd.f32 %v307, %v342
        %v364 = vadd.f32 %v308, %v347
        %v365 = vadd.f32 %v309, %v332
        %v366 = vadd.f32 %v310, %v337
        %v367 = vadd.f32 %v311, %v342
        %v368 = vadd.f32 %v312, %v347
        %v369 = vadd.f32 %v313, %v332
        %v370 = vadd.f32 %v314, %v337
        %v371 = vadd.f32 %v315, %v342
        %v372 = vadd.f32 %v316, %v347
        %v373 = vadd.f32 %v317, %v332
        %v374 = vadd.f32 %v318, %v337
        %v375 = vadd.f32 %v319, %v342
        %v376 = vadd.f32 %v320, %v347
        %v377 = vadd.f32 %v321, %v332
        %v378 = vadd.f32 %v322, %v337
        %v379 = vadd.f32 %v323, %v342
        %v380 = vadd.f32 %v324, %v347
        %s381 = scalar_lea.vmem %s216, 8 [#allocation2]
        %v382 = vld [vmem:[%s381] sm:$0xff]
        %v384 = vrot.slane %v382, 1
        %v385 = vrot.slane %v382, 2
        %v386 = vrot.slane %v382, 3
        %v387 = vrot.slane %v382, 4
        %v388 = vrot.slane %v382, 5
        %v389 = vrot.slane %v382, 6
        %v390 = vrot.slane %v382, 7
        %391 = vset.pattern.permute.xlu0 1
        %392 = vperm.xlu0 %391, %v244
        %v393 = vpop.permute.xlu0 %392
        %395 = vset.pattern.permute.xlu0 1
        %396 = vperm.xlu0 %395, %v245
        %v397 = vpop.permute.xlu0 %396
        %399 = vset.pattern.permute.xlu0 1
        %400 = vperm.xlu0 %399, %v246
        %v401 = vpop.permute.xlu0 %400
        %403 = vset.pattern.permute.xlu0 1
        %404 = vperm.xlu0 %403, %v247
        %v405 = vpop.permute.xlu0 %404
        %v407 = vperm.slane %v382, 0
        %v408 = vperm.slane %v384, 0
        %v409 = vperm.slane %v385, 0
        %v410 = vperm.slane %v386, 0
        %v411 = vperm.slane %v387, 0
        %v412 = vperm.slane %v388, 0
        %v413 = vperm.slane %v389, 0
        %v414 = vperm.slane %v390, 0
        %v423 = vmul.f32 %v393, %v407
        %v424 = vmul.f32 %v397, %v407
        %v425 = vmul.f32 %v401, %v407
        %v426 = vmul.f32 %v405, %v407
        %v427 = vmul.f32 %v393, %v408
        %v428 = vmul.f32 %v397, %v408
        %v429 = vmul.f32 %v401, %v408
        %v430 = vmul.f32 %v405, %v408
        %v431 = vmul.f32 %v393, %v409
        %v432 = vmul.f32 %v397, %v409
        %v433 = vmul.f32 %v401, %v409
        %v434 = vmul.f32 %v405, %v409
        %v435 = vmul.f32 %v393, %v410
        %v436 = vmul.f32 %v397, %v410
        %v437 = vmul.f32 %v401, %v410
        %v438 = vmul.f32 %v405, %v410
        %v439 = vmul.f32 %v393, %v411
        %v440 = vmul.f32 %v397, %v411
        %v441 = vmul.f32 %v401, %v411
        %v442 = vmul.f32 %v405, %v411
        %v443 = vmul.f32 %v393, %v412
        %v444 = vmul.f32 %v397, %v412
        %v445 = vmul.f32 %v401, %v412
        %v446 = vmul.f32 %v405, %v412
        %v447 = vmul.f32 %v393, %v413
        %v448 = vmul.f32 %v397, %v413
        %v449 = vmul.f32 %v401, %v413
        %v450 = vmul.f32 %v405, %v413
        %v451 = vmul.f32 %v393, %v414
        %v452 = vmul.f32 %v397, %v414
        %v453 = vmul.f32 %v401, %v414
        %v454 = vmul.f32 %v405, %v414
        %v455 = vadd.f32 %v349, %v423
        %v456 = vadd.f32 %v350, %v424
        %v457 = vadd.f32 %v351, %v425
        %v458 = vadd.f32 %v352, %v426
        %v459 = vadd.f32 %v353, %v427
        %v460 = vadd.f32 %v354, %v428
        %v461 = vadd.f32 %v355, %v429
        %v462 = vadd.f32 %v356, %v430
        %v463 = vadd.f32 %v357, %v431
        %v464 = vadd.f32 %v358, %v432
        %v465 = vadd.f32 %v359, %v433
        %v466 = vadd.f32 %v360, %v434
        %v467 = vadd.f32 %v361, %v435
        %v468 = vadd.f32 %v362, %v436
        %v469 = vadd.f32 %v363, %v437
        %v470 = vadd.f32 %v364, %v438
        %v471 = vadd.f32 %v365, %v439
        %v472 = vadd.f32 %v366, %v440
        %v473 = vadd.f32 %v367, %v441
        %v474 = vadd.f32 %v368, %v442
        %v475 = vadd.f32 %v369, %v443
        %v476 = vadd.f32 %v370, %v444
        %v477 = vadd.f32 %v371, %v445
        %v478 = vadd.f32 %v372, %v446
        %v479 = vadd.f32 %v373, %v447
        %v480 = vadd.f32 %v374, %v448
        %v481 = vadd.f32 %v375, %v449
        %v482 = vadd.f32 %v376, %v450
        %v483 = vadd.f32 %v377, %v451
        %v484 = vadd.f32 %v378, %v452
        %v485 = vadd.f32 %v379, %v453
        %v486 = vadd.f32 %v380, %v454
        %s487 = scalar_lea.vmem %s216, 16 [#allocation2]
        %v488 = vld [vmem:[%s487] sm:$0xff]
        %v490 = vrot.slane %v488, 1
        %v491 = vrot.slane %v488, 2
        %v492 = vrot.slane %v488, 3
        %v493 = vrot.slane %v488, 4
        %v494 = vrot.slane %v488, 5
        %v495 = vrot.slane %v488, 6
        %v496 = vrot.slane %v488, 7
        %497 = vset.pattern.permute.xlu0 2
        %498 = vperm.xlu0 %497, %v244
        %v499 = vpop.permute.xlu0 %498
        %501 = vset.pattern.permute.xlu0 2
        %502 = vperm.xlu0 %501, %v245
        %v503 = vpop.permute.xlu0 %502
        %505 = vset.pattern.permute.xlu0 2
        %506 = vperm.xlu0 %505, %v246
        %v507 = vpop.permute.xlu0 %506
        %509 = vset.pattern.permute.xlu0 2
        %510 = vperm.xlu0 %509, %v247
        %v511 = vpop.permute.xlu0 %510
        %v513 = vperm.slane %v488, 0
        %v514 = vperm.slane %v490, 0
        %v515 = vperm.slane %v491, 0
        %v516 = vperm.slane %v492, 0
        %v517 = vperm.slane %v493, 0
        %v518 = vperm.slane %v494, 0
        %v519 = vperm.slane %v495, 0
        %v520 = vperm.slane %v496, 0
        %v529 = vmul.f32 %v499, %v513
        %v530 = vmul.f32 %v503, %v513
        %v531 = vmul.f32 %v507, %v513
        %v532 = vmul.f32 %v511, %v513
        %v533 = vmul.f32 %v499, %v514
        %v534 = vmul.f32 %v503, %v514
        %v535 = vmul.f32 %v507, %v514
        %v536 = vmul.f32 %v511, %v514
        %v537 = vmul.f32 %v499, %v515
        %v538 = vmul.f32 %v503, %v515
        %v539 = vmul.f32 %v507, %v515
        %v540 = vmul.f32 %v511, %v515
        %v541 = vmul.f32 %v499, %v516
        %v542 = vmul.f32 %v503, %v516
        %v543 = vmul.f32 %v507, %v516
        %v544 = vmul.f32 %v511, %v516
        %v545 = vmul.f32 %v499, %v517
        %v546 = vmul.f32 %v503, %v517
        %v547 = vmul.f32 %v507, %v517
        %v548 = vmul.f32 %v511, %v517
        %v549 = vmul.f32 %v499, %v518
        %v550 = vmul.f32 %v503, %v518
        %v551 = vmul.f32 %v507, %v518
        %v552 = vmul.f32 %v511, %v518
        %v553 = vmul.f32 %v499, %v519
        %v554 = vmul.f32 %v503, %v519
        %v555 = vmul.f32 %v507, %v519
        %v556 = vmul.f32 %v511, %v519
        %v557 = vmul.f32 %v499, %v520
        %v558 = vmul.f32 %v503, %v520
        %v559 = vmul.f32 %v507, %v520
        %v560 = vmul.f32 %v511, %v520
        %v561 = vadd.f32 %v455, %v529
        %v562 = vadd.f32 %v456, %v530
        %v563 = vadd.f32 %v457, %v531
        %v564 = vadd.f32 %v458, %v532
        %v565 = vadd.f32 %v459, %v533
        %v566 = vadd.f32 %v460, %v534
        %v567 = vadd.f32 %v461, %v535
        %v568 = vadd.f32 %v462, %v536
        %v569 = vadd.f32 %v463, %v537
        %v570 = vadd.f32 %v464, %v538
        %v571 = vadd.f32 %v465, %v539
        %v572 = vadd.f32 %v466, %v540
        %v573 = vadd.f32 %v467, %v541
        %v574 = vadd.f32 %v468, %v542
        %v575 = vadd.f32 %v469, %v543
        %v576 = vadd.f32 %v470, %v544
        %v577 = vadd.f32 %v471, %v545
        %v578 = vadd.f32 %v472, %v546
        %v579 = vadd.f32 %v473, %v547
        %v580 = vadd.f32 %v474, %v548
        %v581 = vadd.f32 %v475, %v549
        %v582 = vadd.f32 %v476, %v550
        %v583 = vadd.f32 %v477, %v551
        %v584 = vadd.f32 %v478, %v552
        %v585 = vadd.f32 %v479, %v553
        %v586 = vadd.f32 %v480, %v554
        %v587 = vadd.f32 %v481, %v555
        %v588 = vadd.f32 %v482, %v556
        %v589 = vadd.f32 %v483, %v557
        %v590 = vadd.f32 %v484, %v558
        %v591 = vadd.f32 %v485, %v559
        %v592 = vadd.f32 %v486, %v560
        %s593 = scalar_lea.vmem %s216, 24 [#allocation2]
        %v594 = vld [vmem:[%s593] sm:$0xff]
        %v596 = vrot.slane %v594, 1
        %v597 = vrot.slane %v594, 2
        %v598 = vrot.slane %v594, 3
        %v599 = vrot.slane %v594, 4
        %v600 = vrot.slane %v594, 5
        %v601 = vrot.slane %v594, 6
        %v602 = vrot.slane %v594, 7
        %603 = vset.pattern.permute.xlu0 3
        %604 = vperm.xlu0 %603, %v244
        %v605 = vpop.permute.xlu0 %604
        %607 = vset.pattern.permute.xlu0 3
        %608 = vperm.xlu0 %607, %v245
        %v609 = vpop.permute.xlu0 %608
        %611 = vset.pattern.permute.xlu0 3
        %612 = vperm.xlu0 %611, %v246
        %v613 = vpop.permute.xlu0 %612
        %615 = vset.pattern.permute.xlu0 3
        %616 = vperm.xlu0 %615, %v247
        %v617 = vpop.permute.xlu0 %616
        %v619 = vperm.slane %v594, 0
        %v620 = vperm.slane %v596, 0
        %v621 = vperm.slane %v597, 0
        %v622 = vperm.slane %v598, 0
        %v623 = vperm.slane %v599, 0
        %v624 = vperm.slane %v600, 0
        %v625 = vperm.slane %v601, 0
        %v626 = vperm.slane %v602, 0
        %v635 = vmul.f32 %v605, %v619
        %v636 = vmul.f32 %v609, %v619
        %v637 = vmul.f32 %v613, %v619
        %v638 = vmul.f32 %v617, %v619
        %v639 = vmul.f32 %v605, %v620
        %v640 = vmul.f32 %v609, %v620
        %v641 = vmul.f32 %v613, %v620
        %v642 = vmul.f32 %v617, %v620
        %v643 = vmul.f32 %v605, %v621
        %v644 = vmul.f32 %v609, %v621
        %v645 = vmul.f32 %v613, %v621
        %v646 = vmul.f32 %v617, %v621
        %v647 = vmul.f32 %v605, %v622
        %v648 = vmul.f32 %v609, %v622
        %v649 = vmul.f32 %v613, %v622
        %v650 = vmul.f32 %v617, %v622
        %v651 = vmul.f32 %v605, %v623
        %v652 = vmul.f32 %v609, %v623
        %v653 = vmul.f32 %v613, %v623
        %v654 = vmul.f32 %v617, %v623
        %v655 = vmul.f32 %v605, %v624
        %v656 = vmul.f32 %v609, %v624
        %v657 = vmul.f32 %v613, %v624
        %v658 = vmul.f32 %v617, %v624
        %v659 = vmul.f32 %v605, %v625
        %v660 = vmul.f32 %v609, %v625
        %v661 = vmul.f32 %v613, %v625
        %v662 = vmul.f32 %v617, %v625
        %v663 = vmul.f32 %v605, %v626
        %v664 = vmul.f32 %v609, %v626
        %v665 = vmul.f32 %v613, %v626
        %v666 = vmul.f32 %v617, %v626
        %v667 = vadd.f32 %v561, %v635
        %v668 = vadd.f32 %v562, %v636
        %v669 = vadd.f32 %v563, %v637
        %v670 = vadd.f32 %v564, %v638
        %v671 = vadd.f32 %v565, %v639
        %v672 = vadd.f32 %v566, %v640
        %v673 = vadd.f32 %v567, %v641
        %v674 = vadd.f32 %v568, %v642
        %v675 = vadd.f32 %v569, %v643
        %v676 = vadd.f32 %v570, %v644
        %v677 = vadd.f32 %v571, %v645
        %v678 = vadd.f32 %v572, %v646
        %v679 = vadd.f32 %v573, %v647
        %v680 = vadd.f32 %v574, %v648
        %v681 = vadd.f32 %v575, %v649
        %v682 = vadd.f32 %v576, %v650
        %v683 = vadd.f32 %v577, %v651
        %v684 = vadd.f32 %v578, %v652
        %v685 = vadd.f32 %v579, %v653
        %v686 = vadd.f32 %v580, %v654
        %v687 = vadd.f32 %v581, %v655
        %v688 = vadd.f32 %v582, %v656
        %v689 = vadd.f32 %v583, %v657
        %v690 = vadd.f32 %v584, %v658
        %v691 = vadd.f32 %v585, %v659
        %v692 = vadd.f32 %v586, %v660
        %v693 = vadd.f32 %v587, %v661
        %v694 = vadd.f32 %v588, %v662
        %v695 = vadd.f32 %v589, %v663
        %v696 = vadd.f32 %v590, %v664
        %v697 = vadd.f32 %v591, %v665
        %v698 = vadd.f32 %v592, %v666
        %s699 = scalar_lea.vmem %s216, 32 [#allocation2]
        %v700 = vld [vmem:[%s699] sm:$0xff]
        %v702 = vrot.slane %v700, 1
        %v703 = vrot.slane %v700, 2
        %v704 = vrot.slane %v700, 3
        %v705 = vrot.slane %v700, 4
        %v706 = vrot.slane %v700, 5
        %v707 = vrot.slane %v700, 6
        %v708 = vrot.slane %v700, 7
        %709 = vset.pattern.permute.xlu0 4
        %710 = vperm.xlu0 %709, %v244
        %v711 = vpop.permute.xlu0 %710
        %713 = vset.pattern.permute.xlu0 4
        %714 = vperm.xlu0 %713, %v245
        %v715 = vpop.permute.xlu0 %714
        %717 = vset.pattern.permute.xlu0 4
        %718 = vperm.xlu0 %717, %v246
        %v719 = vpop.permute.xlu0 %718
        %721 = vset.pattern.permute.xlu0 4
        %722 = vperm.xlu0 %721, %v247
        %v723 = vpop.permute.xlu0 %722
        %v725 = vperm.slane %v700, 0
        %v726 = vperm.slane %v702, 0
        %v727 = vperm.slane %v703, 0
        %v728 = vperm.slane %v704, 0
        %v729 = vperm.slane %v705, 0
        %v730 = vperm.slane %v706, 0
        %v731 = vperm.slane %v707, 0
        %v732 = vperm.slane %v708, 0
        %v741 = vmul.f32 %v711, %v725
        %v742 = vmul.f32 %v715, %v725
        %v743 = vmul.f32 %v719, %v725
        %v744 = vmul.f32 %v723, %v725
        %v745 = vmul.f32 %v711, %v726
        %v746 = vmul.f32 %v715, %v726
        %v747 = vmul.f32 %v719, %v726
        %v748 = vmul.f32 %v723, %v726
        %v749 = vmul.f32 %v711, %v727
        %v750 = vmul.f32 %v715, %v727
        %v751 = vmul.f32 %v719, %v727
        %v752 = vmul.f32 %v723, %v727
        %v753 = vmul.f32 %v711, %v728
        %v754 = vmul.f32 %v715, %v728
        %v755 = vmul.f32 %v719, %v728
        %v756 = vmul.f32 %v723, %v728
        %v757 = vmul.f32 %v711, %v729
        %v758 = vmul.f32 %v715, %v729
        %v759 = vmul.f32 %v719, %v729
        %v760 = vmul.f32 %v723, %v729
        %v761 = vmul.f32 %v711, %v730
        %v762 = vmul.f32 %v715, %v730
        %v763 = vmul.f32 %v719, %v730
        %v764 = vmul.f32 %v723, %v730
        %v765 = vmul.f32 %v711, %v731
        %v766 = vmul.f32 %v715, %v731
        %v767 = vmul.f32 %v719, %v731
        %v768 = vmul.f32 %v723, %v731
        %v769 = vmul.f32 %v711, %v732
        %v770 = vmul.f32 %v715, %v732
        %v771 = vmul.f32 %v719, %v732
        %v772 = vmul.f32 %v723, %v732
        %v773 = vadd.f32 %v667, %v741
        %v774 = vadd.f32 %v668, %v742
        %v775 = vadd.f32 %v669, %v743
        %v776 = vadd.f32 %v670, %v744
        %v777 = vadd.f32 %v671, %v745
        %v778 = vadd.f32 %v672, %v746
        %v779 = vadd.f32 %v673, %v747
        %v780 = vadd.f32 %v674, %v748
        %v781 = vadd.f32 %v675, %v749
        %v782 = vadd.f32 %v676, %v750
        %v783 = vadd.f32 %v677, %v751
        %v784 = vadd.f32 %v678, %v752
        %v785 = vadd.f32 %v679, %v753
        %v786 = vadd.f32 %v680, %v754
        %v787 = vadd.f32 %v681, %v755
        %v788 = vadd.f32 %v682, %v756
        %v789 = vadd.f32 %v683, %v757
        %v790 = vadd.f32 %v684, %v758
        %v791 = vadd.f32 %v685, %v759
        %v792 = vadd.f32 %v686, %v760
        %v793 = vadd.f32 %v687, %v761
        %v794 = vadd.f32 %v688, %v762
        %v795 = vadd.f32 %v689, %v763
        %v796 = vadd.f32 %v690, %v764
        %v797 = vadd.f32 %v691, %v765
        %v798 = vadd.f32 %v692, %v766
        %v799 = vadd.f32 %v693, %v767
        %v800 = vadd.f32 %v694, %v768
        %v801 = vadd.f32 %v695, %v769
        %v802 = vadd.f32 %v696, %v770
        %v803 = vadd.f32 %v697, %v771
        %v804 = vadd.f32 %v698, %v772
        %s805 = scalar_lea.vmem %s216, 40 [#allocation2]
        %v806 = vld [vmem:[%s805] sm:$0xff]
        %v808 = vrot.slane %v806, 1
        %v809 = vrot.slane %v806, 2
        %v810 = vrot.slane %v806, 3
        %v811 = vrot.slane %v806, 4
        %v812 = vrot.slane %v806, 5
        %v813 = vrot.slane %v806, 6
        %v814 = vrot.slane %v806, 7
        %815 = vset.pattern.permute.xlu0 5
        %816 = vperm.xlu0 %815, %v244
        %v817 = vpop.permute.xlu0 %816
        %819 = vset.pattern.permute.xlu0 5
        %820 = vperm.xlu0 %819, %v245
        %v821 = vpop.permute.xlu0 %820
        %823 = vset.pattern.permute.xlu0 5
        %824 = vperm.xlu0 %823, %v246
        %v825 = vpop.permute.xlu0 %824
        %827 = vset.pattern.permute.xlu0 5
        %828 = vperm.xlu0 %827, %v247
        %v829 = vpop.permute.xlu0 %828
        %v831 = vperm.slane %v806, 0
        %v832 = vperm.slane %v808, 0
        %v833 = vperm.slane %v809, 0
        %v834 = vperm.slane %v810, 0
        %v835 = vperm.slane %v811, 0
        %v836 = vperm.slane %v812, 0
        %v837 = vperm.slane %v813, 0
        %v838 = vperm.slane %v814, 0
        %v847 = vmul.f32 %v817, %v831
        %v848 = vmul.f32 %v821, %v831
        %v849 = vmul.f32 %v825, %v831
        %v850 = vmul.f32 %v829, %v831
        %v851 = vmul.f32 %v817, %v832
        %v852 = vmul.f32 %v821, %v832
        %v853 = vmul.f32 %v825, %v832
        %v854 = vmul.f32 %v829, %v832
        %v855 = vmul.f32 %v817, %v833
        %v856 = vmul.f32 %v821, %v833
        %v857 = vmul.f32 %v825, %v833
        %v858 = vmul.f32 %v829, %v833
        %v859 = vmul.f32 %v817, %v834
        %v860 = vmul.f32 %v821, %v834
        %v861 = vmul.f32 %v825, %v834
        %v862 = vmul.f32 %v829, %v834
        %v863 = vmul.f32 %v817, %v835
        %v864 = vmul.f32 %v821, %v835
        %v865 = vmul.f32 %v825, %v835
        %v866 = vmul.f32 %v829, %v835
        %v867 = vmul.f32 %v817, %v836
        %v868 = vmul.f32 %v821, %v836
        %v869 = vmul.f32 %v825, %v836
        %v870 = vmul.f32 %v829, %v836
        %v871 = vmul.f32 %v817, %v837
        %v872 = vmul.f32 %v821, %v837
        %v873 = vmul.f32 %v825, %v837
        %v874 = vmul.f32 %v829, %v837
        %v875 = vmul.f32 %v817, %v838
        %v876 = vmul.f32 %v821, %v838
        %v877 = vmul.f32 %v825, %v838
        %v878 = vmul.f32 %v829, %v838
        %v879 = vadd.f32 %v773, %v847
        %v880 = vadd.f32 %v774, %v848
        %v881 = vadd.f32 %v775, %v849
        %v882 = vadd.f32 %v776, %v850
        %v883 = vadd.f32 %v777, %v851
        %v884 = vadd.f32 %v778, %v852
        %v885 = vadd.f32 %v779, %v853
        %v886 = vadd.f32 %v780, %v854
        %v887 = vadd.f32 %v781, %v855
        %v888 = vadd.f32 %v782, %v856
        %v889 = vadd.f32 %v783, %v857
        %v890 = vadd.f32 %v784, %v858
        %v891 = vadd.f32 %v785, %v859
        %v892 = vadd.f32 %v786, %v860
        %v893 = vadd.f32 %v787, %v861
        %v894 = vadd.f32 %v788, %v862
        %v895 = vadd.f32 %v789, %v863
        %v896 = vadd.f32 %v790, %v864
        %v897 = vadd.f32 %v791, %v865
        %v898 = vadd.f32 %v792, %v866
        %v899 = vadd.f32 %v793, %v867
        %v900 = vadd.f32 %v794, %v868
        %v901 = vadd.f32 %v795, %v869
        %v902 = vadd.f32 %v796, %v870
        %v903 = vadd.f32 %v797, %v871
        %v904 = vadd.f32 %v798, %v872
        %v905 = vadd.f32 %v799, %v873
        %v906 = vadd.f32 %v800, %v874
        %v907 = vadd.f32 %v801, %v875
        %v908 = vadd.f32 %v802, %v876
        %v909 = vadd.f32 %v803, %v877
        %v910 = vadd.f32 %v804, %v878
        %s911 = scalar_lea.vmem %s216, 48 [#allocation2]
        %v912 = vld [vmem:[%s911] sm:$0xff]
        %v914 = vrot.slane %v912, 1
        %v915 = vrot.slane %v912, 2
        %v916 = vrot.slane %v912, 3
        %v917 = vrot.slane %v912, 4
        %v918 = vrot.slane %v912, 5
        %v919 = vrot.slane %v912, 6
        %v920 = vrot.slane %v912, 7
        %921 = vset.pattern.permute.xlu0 6
        %922 = vperm.xlu0 %921, %v244
        %v923 = vpop.permute.xlu0 %922
        %925 = vset.pattern.permute.xlu0 6
        %926 = vperm.xlu0 %925, %v245
        %v927 = vpop.permute.xlu0 %926
        %929 = vset.pattern.permute.xlu0 6
        %930 = vperm.xlu0 %929, %v246
        %v931 = vpop.permute.xlu0 %930
        %933 = vset.pattern.permute.xlu0 6
        %934 = vperm.xlu0 %933, %v247
        %v935 = vpop.permute.xlu0 %934
        %v937 = vperm.slane %v912, 0
        %v938 = vperm.slane %v914, 0
        %v939 = vperm.slane %v915, 0
        %v940 = vperm.slane %v916, 0
        %v941 = vperm.slane %v917, 0
        %v942 = vperm.slane %v918, 0
        %v943 = vperm.slane %v919, 0
        %v944 = vperm.slane %v920, 0
        %v953 = vmul.f32 %v923, %v937
        %v954 = vmul.f32 %v927, %v937
        %v955 = vmul.f32 %v931, %v937
        %v956 = vmul.f32 %v935, %v937
        %v957 = vmul.f32 %v923, %v938
        %v958 = vmul.f32 %v927, %v938
        %v959 = vmul.f32 %v931, %v938
        %v960 = vmul.f32 %v935, %v938
        %v961 = vmul.f32 %v923, %v939
        %v962 = vmul.f32 %v927, %v939
        %v963 = vmul.f32 %v931, %v939
        %v964 = vmul.f32 %v935, %v939
        %v965 = vmul.f32 %v923, %v940
        %v966 = vmul.f32 %v927, %v940
        %v967 = vmul.f32 %v931, %v940
        %v968 = vmul.f32 %v935, %v940
        %v969 = vmul.f32 %v923, %v941
        %v970 = vmul.f32 %v927, %v941
        %v971 = vmul.f32 %v931, %v941
        %v972 = vmul.f32 %v935, %v941
        %v973 = vmul.f32 %v923, %v942
        %v974 = vmul.f32 %v927, %v942
        %v975 = vmul.f32 %v931, %v942
        %v976 = vmul.f32 %v935, %v942
        %v977 = vmul.f32 %v923, %v943
        %v978 = vmul.f32 %v927, %v943
        %v979 = vmul.f32 %v931, %v943
        %v980 = vmul.f32 %v935, %v943
        %v981 = vmul.f32 %v923, %v944
        %v982 = vmul.f32 %v927, %v944
        %v983 = vmul.f32 %v931, %v944
        %v984 = vmul.f32 %v935, %v944
        %v985 = vadd.f32 %v879, %v953
        %v986 = vadd.f32 %v880, %v954
        %v987 = vadd.f32 %v881, %v955
        %v988 = vadd.f32 %v882, %v956
        %v989 = vadd.f32 %v883, %v957
        %v990 = vadd.f32 %v884, %v958
        %v991 = vadd.f32 %v885, %v959
        %v992 = vadd.f32 %v886, %v960
        %v993 = vadd.f32 %v887, %v961
        %v994 = vadd.f32 %v888, %v962
        %v995 = vadd.f32 %v889, %v963
        %v996 = vadd.f32 %v890, %v964
        %v997 = vadd.f32 %v891, %v965
        %v998 = vadd.f32 %v892, %v966
        %v999 = vadd.f32 %v893, %v967
        %v1000 = vadd.f32 %v894, %v968
        %v1001 = vadd.f32 %v895, %v969
        %v1002 = vadd.f32 %v896, %v970
        %v1003 = vadd.f32 %v897, %v971
        %v1004 = vadd.f32 %v898, %v972
        %v1005 = vadd.f32 %v899, %v973
        %v1006 = vadd.f32 %v900, %v974
        %v1007 = vadd.f32 %v901, %v975
        %v1008 = vadd.f32 %v902, %v976
        %v1009 = vadd.f32 %v903, %v977
        %v1010 = vadd.f32 %v904, %v978
        %v1011 = vadd.f32 %v905, %v979
        %v1012 = vadd.f32 %v906, %v980
        %v1013 = vadd.f32 %v907, %v981
        %v1014 = vadd.f32 %v908, %v982
        %v1015 = vadd.f32 %v909, %v983
        %v1016 = vadd.f32 %v910, %v984
        %v1017 = vmax.f32 %v985, 0.0
        %v1018 = vmax.f32 %v986, 0.0
        %v1019 = vmax.f32 %v987, 0.0
        %v1020 = vmax.f32 %v988, 0.0
        %v1021 = vmax.f32 %v989, 0.0
        %v1022 = vmax.f32 %v990, 0.0
        %v1023 = vmax.f32 %v991, 0.0
        %v1024 = vmax.f32 %v992, 0.0
        %v1025 = vmax.f32 %v993, 0.0
        %v1026 = vmax.f32 %v994, 0.0
        %v1027 = vmax.f32 %v995, 0.0
        %v1028 = vmax.f32 %v996, 0.0
        %v1029 = vmax.f32 %v997, 0.0
        %v1030 = vmax.f32 %v998, 0.0
        %v1031 = vmax.f32 %v999, 0.0
        %v1032 = vmax.f32 %v1000, 0.0
        %v1033 = vmax.f32 %v1001, 0.0
        %v1034 = vmax.f32 %v1002, 0.0
        %v1035 = vmax.f32 %v1003, 0.0
        %v1036 = vmax.f32 %v1004, 0.0
        %v1037 = vmax.f32 %v1005, 0.0
        %v1038 = vmax.f32 %v1006, 0.0
        %v1039 = vmax.f32 %v1007, 0.0
        %v1040 = vmax.f32 %v1008, 0.0
        %v1041 = vmax.f32 %v1009, 0.0
        %v1042 = vmax.f32 %v1010, 0.0
        %v1043 = vmax.f32 %v1011, 0.0
        %v1044 = vmax.f32 %v1012, 0.0
        %v1045 = vmax.f32 %v1013, 0.0
        %v1046 = vmax.f32 %v1014, 0.0
        %v1047 = vmax.f32 %v1015, 0.0
        %v1048 = vmax.f32 %v1016, 0.0
        %vm1049 = vcmask 916480
        %v1050 = vsel %vm1049, %v1017, 0.0
        %1051 = vadd.xlane.f32.xlu0 %v1050
        %v1052 = vpop.xlane.xlu0 %1051
        %v1053 = vsel %vm1049, %v1018, 0.0
        %1054 = vadd.xlane.f32.xlu0 %v1053
        %v1055 = vpop.xlane.xlu0 %1054
        %v1056 = vsel %vm1049, %v1019, 0.0
        %1057 = vadd.xlane.f32.xlu0 %v1056
        %v1058 = vpop.xlane.xlu0 %1057
        %v1059 = vsel %vm1049, %v1020, 0.0
        %1060 = vadd.xlane.f32.xlu0 %v1059
        %v1061 = vpop.xlane.xlu0 %1060
        %v1062 = vsel %vm1049, %v1021, 0.0
        %1063 = vadd.xlane.f32.xlu0 %v1062
        %v1064 = vpop.xlane.xlu0 %1063
        %v1065 = vsel %vm1049, %v1022, 0.0
        %1066 = vadd.xlane.f32.xlu0 %v1065
        %v1067 = vpop.xlane.xlu0 %1066
        %v1068 = vsel %vm1049, %v1023, 0.0
        %1069 = vadd.xlane.f32.xlu0 %v1068
        %v1070 = vpop.xlane.xlu0 %1069
        %v1071 = vsel %vm1049, %v1024, 0.0
        %1072 = vadd.xlane.f32.xlu0 %v1071
        %v1073 = vpop.xlane.xlu0 %1072
        %v1074 = vsel %vm1049, %v1025, 0.0
        %1075 = vadd.xlane.f32.xlu0 %v1074
        %v1076 = vpop.xlane.xlu0 %1075
        %v1077 = vsel %vm1049, %v1026, 0.0
        %1078 = vadd.xlane.f32.xlu0 %v1077
        %v1079 = vpop.xlane.xlu0 %1078
        %v1080 = vsel %vm1049, %v1027, 0.0
        %1081 = vadd.xlane.f32.xlu0 %v1080
        %v1082 = vpop.xlane.xlu0 %1081
        %v1083 = vsel %vm1049, %v1028, 0.0
        %1084 = vadd.xlane.f32.xlu0 %v1083
        %v1085 = vpop.xlane.xlu0 %1084
        %v1086 = vsel %vm1049, %v1029, 0.0
        %1087 = vadd.xlane.f32.xlu0 %v1086
        %v1088 = vpop.xlane.xlu0 %1087
        %v1089 = vsel %vm1049, %v1030, 0.0
        %1090 = vadd.xlane.f32.xlu0 %v1089
        %v1091 = vpop.xlane.xlu0 %1090
        %v1092 = vsel %vm1049, %v1031, 0.0
        %1093 = vadd.xlane.f32.xlu0 %v1092
        %v1094 = vpop.xlane.xlu0 %1093
        %v1095 = vsel %vm1049, %v1032, 0.0
        %1096 = vadd.xlane.f32.xlu0 %v1095
        %v1097 = vpop.xlane.xlu0 %1096
        %v1098 = vsel %vm1049, %v1033, 0.0
        %1099 = vadd.xlane.f32.xlu0 %v1098
        %v1100 = vpop.xlane.xlu0 %1099
        %v1101 = vsel %vm1049, %v1034, 0.0
        %1102 = vadd.xlane.f32.xlu0 %v1101
        %v1103 = vpop.xlane.xlu0 %1102
        %v1104 = vsel %vm1049, %v1035, 0.0
        %1105 = vadd.xlane.f32.xlu0 %v1104
        %v1106 = vpop.xlane.xlu0 %1105
        %v1107 = vsel %vm1049, %v1036, 0.0
        %1108 = vadd.xlane.f32.xlu0 %v1107
        %v1109 = vpop.xlane.xlu0 %1108
        %v1110 = vsel %vm1049, %v1037, 0.0
        %1111 = vadd.xlane.f32.xlu0 %v1110
        %v1112 = vpop.xlane.xlu0 %1111
        %v1113 = vsel %vm1049, %v1038, 0.0
        %1114 = vadd.xlane.f32.xlu0 %v1113
        %v1115 = vpop.xlane.xlu0 %1114
        %v1116 = vsel %vm1049, %v1039, 0.0
        %1117 = vadd.xlane.f32.xlu0 %v1116
        %v1118 = vpop.xlane.xlu0 %1117
        %v1119 = vsel %vm1049, %v1040, 0.0
        %1120 = vadd.xlane.f32.xlu0 %v1119
        %v1121 = vpop.xlane.xlu0 %1120
        %v1122 = vsel %vm1049, %v1041, 0.0
        %1123 = vadd.xlane.f32.xlu0 %v1122
        %v1124 = vpop.xlane.xlu0 %1123
        %v1125 = vsel %vm1049, %v1042, 0.0
        %1126 = vadd.xlane.f32.xlu0 %v1125
        %v1127 = vpop.xlane.xlu0 %1126
        %v1128 = vsel %vm1049, %v1043, 0.0
        %1129 = vadd.xlane.f32.xlu0 %v1128
        %v1130 = vpop.xlane.xlu0 %1129
        %v1131 = vsel %vm1049, %v1044, 0.0
        %1132 = vadd.xlane.f32.xlu0 %v1131
        %v1133 = vpop.xlane.xlu0 %1132
        %v1134 = vsel %vm1049, %v1045, 0.0
        %1135 = vadd.xlane.f32.xlu0 %v1134
        %v1136 = vpop.xlane.xlu0 %1135
        %v1137 = vsel %vm1049, %v1046, 0.0
        %1138 = vadd.xlane.f32.xlu0 %v1137
        %v1139 = vpop.xlane.xlu0 %1138
        %v1140 = vsel %vm1049, %v1047, 0.0
        %1141 = vadd.xlane.f32.xlu0 %v1140
        %v1142 = vpop.xlane.xlu0 %1141
        %v1143 = vsel %vm1049, %v1048, 0.0
        %1144 = vadd.xlane.f32.xlu0 %v1143
        %v1145 = vpop.xlane.xlu0 %1144
        %v1146 = vmul.f32 %v1052, 0.008928572
        %v1147 = vmul.f32 %v1055, 0.008928572
        %v1148 = vmul.f32 %v1058, 0.008928572
        %v1149 = vmul.f32 %v1061, 0.008928572
        %v1150 = vmul.f32 %v1064, 0.008928572
        %v1151 = vmul.f32 %v1067, 0.008928572
        %v1152 = vmul.f32 %v1070, 0.008928572
        %v1153 = vmul.f32 %v1073, 0.008928572
        %v1154 = vmul.f32 %v1076, 0.008928572
        %v1155 = vmul.f32 %v1079, 0.008928572
        %v1156 = vmul.f32 %v1082, 0.008928572
        %v1157 = vmul.f32 %v1085, 0.008928572
        %v1158 = vmul.f32 %v1088, 0.008928572
        %v1159 = vmul.f32 %v1091, 0.008928572
        %v1160 = vmul.f32 %v1094, 0.008928572
        %v1161 = vmul.f32 %v1097, 0.008928572
        %v1162 = vmul.f32 %v1100, 0.008928572
        %v1163 = vmul.f32 %v1103, 0.008928572
        %v1164 = vmul.f32 %v1106, 0.008928572
        %v1165 = vmul.f32 %v1109, 0.008928572
        %v1166 = vmul.f32 %v1112, 0.008928572
        %v1167 = vmul.f32 %v1115, 0.008928572
        %v1168 = vmul.f32 %v1118, 0.008928572
        %v1169 = vmul.f32 %v1121, 0.008928572
        %v1170 = vmul.f32 %v1124, 0.008928572
        %v1171 = vmul.f32 %v1127, 0.008928572
        %v1172 = vmul.f32 %v1130, 0.008928572
        %v1173 = vmul.f32 %v1133, 0.008928572
        %v1174 = vmul.f32 %v1136, 0.008928572
        %v1175 = vmul.f32 %v1139, 0.008928572
        %v1176 = vmul.f32 %v1142, 0.008928572
        %v1177 = vmul.f32 %v1145, 0.008928572
        %v1178 = vld [vmem:[%s3] sm:$0xff]
        %v1179 = vld [vmem:[%s3 + $0x8] sm:$0xff]
        %v1180 = vld [vmem:[%s3 + $0x10] sm:$0xff]
        %v1181 = vld [vmem:[%s3 + $0x18] sm:$0xff]
        %v1182 = vld [vmem:[%s4] sm:$0x1]
        %v1184 = vperm.slane %v1182, 0
        %v1218 = vlaneseq
        %v1219 = vand.u32 %v1218, 127
        %v1220 = vperm.slane %v1146, %v1219
        %v1221 = vadd.s32 %v1219, 4294967288
        %v1222 = vperm.slane %v1147, %v1221
        %vm1223 = vcmask 130112
        %v1224 = vsel %vm1223, %v1222, %v1220
        %v1225 = vadd.s32 %v1219, 4294967280
        %v1226 = vperm.slane %v1148, %v1225
        %vm1227 = vcmask 195712
        %v1228 = vsel %vm1227, %v1226, %v1224
        %v1229 = vadd.s32 %v1219, 4294967272
        %v1230 = vperm.slane %v1149, %v1229
        %vm1231 = vcmask 261312
        %v1232 = vsel %vm1231, %v1230, %v1228
        %v1233 = vperm.slane %v1150, %v1219
        %v1234 = vperm.slane %v1151, %v1221
        %v1235 = vsel %vm1223, %v1234, %v1233
        %v1236 = vperm.slane %v1152, %v1225
        %v1237 = vsel %vm1227, %v1236, %v1235
        %v1238 = vperm.slane %v1153, %v1229
        %v1239 = vsel %vm1231, %v1238, %v1237
        %v1240 = vperm.slane %v1154, %v1219
        %v1241 = vperm.slane %v1155, %v1221
        %v1242 = vsel %vm1223, %v1241, %v1240
        %v1243 = vperm.slane %v1156, %v1225
        %v1244 = vsel %vm1227, %v1243, %v1242
        %v1245 = vperm.slane %v1157, %v1229
        %v1246 = vsel %vm1231, %v1245, %v1244
        %v1247 = vperm.slane %v1158, %v1219
        %v1248 = vperm.slane %v1159, %v1221
        %v1249 = vsel %vm1223, %v1248, %v1247
        %v1250 = vperm.slane %v1160, %v1225
        %v1251 = vsel %vm1227, %v1250, %v1249
        %v1252 = vperm.slane %v1161, %v1229
        %v1253 = vsel %vm1231, %v1252, %v1251
        %v1254 = vperm.slane %v1162, %v1219
        %v1255 = vperm.slane %v1163, %v1221
        %v1256 = vsel %vm1223, %v1255, %v1254
        %v1257 = vperm.slane %v1164, %v1225
        %v1258 = vsel %vm1227, %v1257, %v1256
        %v1259 = vperm.slane %v1165, %v1229
        %v1260 = vsel %vm1231, %v1259, %v1258
        %v1261 = vperm.slane %v1166, %v1219
        %v1262 = vperm.slane %v1167, %v1221
        %v1263 = vsel %vm1223, %v1262, %v1261
        %v1264 = vperm.slane %v1168, %v1225
        %v1265 = vsel %vm1227, %v1264, %v1263
        %v1266 = vperm.slane %v1169, %v1229
        %v1267 = vsel %vm1231, %v1266, %v1265
        %v1268 = vperm.slane %v1170, %v1219
        %v1269 = vperm.slane %v1171, %v1221
        %v1270 = vsel %vm1223, %v1269, %v1268
        %v1271 = vperm.slane %v1172, %v1225
        %v1272 = vsel %vm1227, %v1271, %v1270
        %v1273 = vperm.slane %v1173, %v1229
        %v1274 = vsel %vm1231, %v1273, %v1272
        %v1275 = vperm.slane %v1174, %v1219
        %v1276 = vperm.slane %v1175, %v1221
        %v1277 = vsel %vm1223, %v1276, %v1275
        %v1278 = vperm.slane %v1176, %v1225
        %v1279 = vsel %vm1227, %v1278, %v1277
        %v1280 = vperm.slane %v1177, %v1229
        %v1281 = vsel %vm1231, %v1280, %v1279
        %vm1282 = vcmask 1041409
        %v1283 = vsel %vm1282, %v1239, %v1232
        %vm1284 = vcmask 1042434
        %v1285 = vsel %vm1284, %v1246, %v1283
        %vm1286 = vcmask 1043459
        %v1287 = vsel %vm1286, %v1253, %v1285
        %vm1288 = vcmask 1044484
        %v1289 = vsel %vm1288, %v1260, %v1287
        %vm1290 = vcmask 1045509
        %v1291 = vsel %vm1290, %v1267, %v1289
        %vm1292 = vcmask 1046534
        %v1293 = vsel %vm1292, %v1274, %v1291
        %vm1294 = vcmask 1047559
        %v1295 = vsel %vm1294, %v1281, %v1293
        %vm1296 = vcmask 261120
        %v1297 = vsel %vm1296, %v1295, 0
        %1299 = vmatpush.msra.mxu0 0.0
        %1300 = vmatpush.msra.mxu0 0.0
        %1301 = vmatpush.msra.mxu0 0.0
        %1302 = vmatpush.msra.mxu0 0.0
        %1303 = vmatpush.msra.mxu0 0.0
        %1304 = vmatpush.msra.mxu0 0.0
        %1305 = vmatpush.msra.mxu0 0.0
        %1306 = vmatpush.msra.mxu0 0.0
        %1307 = vmatpush.msra.mxu0 0.0
        %1308 = vmatpush.msra.mxu0 0.0
        %1309 = vmatpush.msra.mxu0 0.0
        %1310 = vmatpush.msra.mxu0 0.0
        %1311 = vmatpush.msra.mxu0 %v1181
        %1312 = vmatpush.msra.mxu0 %v1180
        %1313 = vmatpush.msra.mxu0 %v1179
        %1314 = vmatpush.msra.mxu0 %v1178
        %1315 = vmatmul.f32.gmra.mxu0 %v1297
        %v1316 = vpop.f32.mrf.mxu0
        %v1317 = vadd.f32 %v1184, %v1316
        %1318 = vdwg.mxu0
        %1319 = vst [vmem:[%s243] sm:$0xff] %v1317
        %s1320 = sand.u32 %s140, 1
        %s1321 = scalar_lea.sflag [#allocation4], %s1320
        %s1322 = sand.u32 %s140, 1
        %s1323 = smul.addr %s1322, 8
        %s1324 = scalar_lea.vmem [#allocation5], %s1323
        // Predicated region
        $region45: #{tpu_custom_call.1} parent=39 // pred_check
          %p1325 = pneg %p150
        $region46: #{tpu_custom_call.1} parent=39 // pred_check_branch
          %1327 = sbr.rel (%p1325) target = $region48
        $region47: #{tpu_custom_call.1} parent=39 // pred_region
          %1329 = vsyncadd %s1321, 0
          %s1330 = smul.addr %s22, 8
          %s1331 = scalar_lea.hbm %s5, %s1330
          %s1333 = sshll.u32 %s1324, 4
          %s1334 = int_to_ptr.vmem [resolvable:$true] %s1333
          %s1335 = sshll.u32 %s1331, 4
          %s1336 = int_to_ptr.hbm [resolvable:$true] %s1335
          %1338 = dma.vmem_to_hbm [thread:$0]  %s1334, 128, %s1336, %s1321
        $region48: #{tpu_custom_call.1} parent=39 // pred_fallthru
          _
      $region40: #{tpu_custom_call.1} parent=5 // pred_fallthru
        _
      %p1339 = scmp.le.s32.totalorder 2, %s17
      // Predicated region
      $region49: #{tpu_custom_call.1} parent=5 // pred_check
        %p1340 = pneg %p1339
      $region50: #{tpu_custom_call.1} parent=5 // pred_check_branch
        %1342 = sbr.rel (%p1340) target = $region52
      $region51: #{tpu_custom_call.1} parent=5 // pred_region
        %s1343 = ssub.s32 %s17, 2
        // Predicated region
        $region53: #{tpu_custom_call.1} parent=51 // pred_check
          %p1344 = pneg %p156
        $region54: #{tpu_custom_call.1} parent=51 // pred_check_branch
          %1346 = sbr.rel (%p1344) target = $region56
        $region55: #{tpu_custom_call.1} parent=51 // pred_region
          %s1347 = sand.u32 %s141, 1
          %s1348 = scalar_lea.sflag [#allocation4], %s1347
          %s1349 = sand.u32 %s141, 1
          %s1350 = smul.addr %s1349, 8
          %s1351 = scalar_lea.vmem [#allocation5], %s1350
          %1353 = dma.done %s1348, 128
        $region56: #{tpu_custom_call.1} parent=51 // pred_fallthru
          _
      $region52: #{tpu_custom_call.1} parent=5 // pred_fallthru
        _
    $region6: #{tpu_custom_call.1} parent=1 // loop_footer
      %s21 = sadd.s32 1, %s17
    $region7: #{tpu_custom_call.1} parent=1 // loop_footer_branch
      %16 = sbr.rel target = $region3
    $region8: #{tpu_custom_call.1} parent=1 // loop_exit
      _
    %1354 = vsyncpa [#allocation3], 1
    %s1355 = scalar_lea.sflag [#allocation3], 1
    %1356 = vsyncpa %s1355, 1
    %1357 = vsyncpa [#allocation4], 1
    %s1358 = scalar_lea.sflag [#allocation4], 1
    %1359 = vsyncpa %s1358, 1

</llo_original>
